<compile_context>
chip_gen: v5e
topology: v5e:2x2
jax: 0.10.0
libtpu: 0.0.40
codegen_flags: <defaults>
</compile_context>

<pallas_src>
import jax
import jax.numpy as jnp
from jax.experimental import pallas as pl
from jax.experimental.pallas import tpu as pltpu


def _copy_kernel(x_ref, o_ref):
    # Pure elementwise identity of the current lane-dense tile.
    o_ref[...] = x_ref[...]


_LANE_CANDIDATES = (4096, 2048, 1024, 512, 256, 128)
# 2 MiB/tile: in+out double-buffered = 8 MiB in flight, safely under v5e's
# 16 MiB default scoped VMEM (and trivially under v6e/v7x limits).
_TILE_BYTE_BUDGET = 2 * 1024 * 1024


def _sublane_multiple(dtype) -> int:
    """Dtype-aware sublane packing multiple (8 for 32-bit, 16 bf16, 32 int8/fp8)."""
    itemsize = jnp.dtype(dtype).itemsize
    if itemsize >= 4:
        return 8
    if itemsize == 2:
        return 16
    return 32


def _pick_lane(total: int, sub: int):
    """Largest lane width (multiple of 128) dividing total, preferring rows % sub == 0."""
    for lane in _LANE_CANDIDATES:
        if total % lane == 0 and (total // lane) % sub == 0:
            return lane
    for lane in _LANE_CANDIDATES:
        if total % lane == 0:
            return lane
    return None


def _plan_tiles(rows: int, lane: int, itemsize: int, sub: int):
    """Pick (row_tile, grid_steps). Tiles stay under _TILE_BYTE_BUDGET; remainder
    blocks are masked (block_shape need not divide rows)."""
    budget_rows = _TILE_BYTE_BUDGET // (lane * itemsize)
    budget_rows = max((budget_rows // sub) * sub, sub)
    if rows > budget_rows:
        row_tile = budget_rows
    else:
        # Whole array fits in one tile; still split into >= 2 tiles when we can
        # do so on a sublane boundary, so v7x's two TensorCores both get work.
        half = ((rows // 2) // sub) * sub
        row_tile = half if half >= sub else rows
    return row_tile, pl.cdiv(rows, row_tile)


def identity(x: jax.Array) -> jax.Array:
    """nn.Identity forward: return x unchanged.

    Zero data movement (no pallas_call, no HBM read/write). This is the
    highest-value optimization from the perf review."""
    return x


@jax.jit
def identity_copy(x: jax.Array) -> jax.Array:
    """Materialized identity: a fresh buffer equal to x, produced by a tiled,
    lane-dense Pallas memcpy kernel (mem-bound, DMA-pipelined)."""
    total = x.size
    if total == 0:
        return x

    itemsize = jnp.dtype(x.dtype).itemsize
    nbytes = total * itemsize
    sub = _sublane_multiple(x.dtype)
    cost = pl.CostEstimate(flops=0, transcendentals=0, bytes_accessed=2 * nbytes)

    lane = _pick_lane(total, sub)
    if lane is None:
        # Element count not a multiple of 128. Only use a single full-array
        # block when it is small enough to be a non-issue for VMEM (v7x has
        # just 64 MiB physical); never map a huge awkward array as one block.
        if nbytes <= 8 * 1024 * 1024:
            return pl.pallas_call(
                _copy_kernel,
                out_shape=jax.ShapeDtypeStruct(x.shape, x.dtype),
                cost_estimate=cost,
            )(x)
        # TODO(synk): large non-128-multiple totals have no clean lane-dense
        # tiling without padding; fall back to a plain XLA copy.
        return jnp.copy(x)

    rows = total // lane
    row_tile, grid_steps = _plan_tiles(rows, lane, itemsize, sub)

    xf = x.reshape(rows, lane)
    yf = pl.pallas_call(
        _copy_kernel,
        out_shape=jax.ShapeDtypeStruct((rows, lane), x.dtype),
        grid=(grid_steps,),
        in_specs=[pl.BlockSpec((row_tile, lane), lambda i: (i, 0))],
        out_specs=pl.BlockSpec((row_tile, lane), lambda i: (i, 0)),
        compiler_params=pltpu.CompilerParams(
            dimension_semantics=("parallel",),
        ),
        cost_estimate=cost,
    )(xf)
    return yf.reshape(x.shape)


if __name__ == "__main__":
    key = jax.random.PRNGKey(0)
    # Small NCHW input, consistent with a DLA feature map.
    x = jax.random.normal(key, (2, 4, 16, 16), dtype=jnp.float32)

    # True Identity forward: zero data movement.
    y = identity(x)
    jax.block_until_ready(y)
    assert y.shape == x.shape and y.dtype == x.dtype
    assert bool(jnp.array_equal(y, x))

    # Pallas copy kernel on the demo input (single lane-dense tile).
    y2 = identity_copy(x)
    jax.block_until_ready(y2)
    assert y2.shape == x.shape and y2.dtype == x.dtype
    assert bool(jnp.array_equal(y2, x))

    # Slightly larger feature map: exercises the multi-step "parallel" grid path.
    x3 = jax.random.normal(jax.random.PRNGKey(1), (4, 32, 32, 32), dtype=jnp.float32)
    y3 = identity_copy(x3)
    jax.block_until_ready(y3)
    assert bool(jnp.array_equal(y3, x3))

    # Awkward (non-128-multiple) small shape: exercises the full-block fallback.
    x4 = jax.random.normal(jax.random.PRNGKey(2), (3, 5, 7), dtype=jnp.float32)
    y4 = identity_copy(x4)
    jax.block_until_ready(y4)
    assert bool(jnp.array_equal(y4, x4))

    print("KERNEL_OK")
</pallas_src>

<mosaic_0001>
module attributes {stable_mosaic.version = 11 : i64} {
  func.func @_copy_kernel(%arg0: i32, %arg1: memref<8x256xf32, #tpu.memory_space<vmem>>, %arg2: memref<8x256xf32, #tpu.memory_space<vmem>>) attributes {dimension_semantics = [#tpu.dimension_semantics<parallel>], iteration_bounds = array<i64: 1>, scalar_prefetch = 0 : i64, scratch_operands = 0 : i64, tpu.core_type = #tpu.core_type<tc>, window_params = [{transform_indices = @transform_0, window_bounds = array<i64: 8, 256>}, {transform_indices = @transform_1, window_bounds = array<i64: 8, 256>}]} {
    %c0 = arith.constant 0 : index
    %c0_0 = arith.constant 0 : index
    %0 = vector.load %arg1[%c0, %c0_0] : memref<8x256xf32, #tpu.memory_space<vmem>>, vector<8x256xf32>
    %c0_1 = arith.constant 0 : index
    %c0_2 = arith.constant 0 : index
    %1 = vector.load %arg2[%c0_1, %c0_2] : memref<8x256xf32, #tpu.memory_space<vmem>>, vector<8x256xf32>
    tpu.vector_store %arg2[%c0_1, %c0_2], %0 {strides = array<i32>} : memref<8x256xf32, #tpu.memory_space<vmem>>, vector<8x256xf32>,
    return
  }
  func.func @transform_0(%arg0: i32) -> (i32, i32) {
    %c0_i32 = arith.constant 0 : i32
    %c0_i32_0 = arith.constant 0 : i32
    return %arg0, %c0_i32 : i32, i32
  }
  func.func @transform_1(%arg0: i32) -> (i32, i32) {
    %c0_i32 = arith.constant 0 : i32
    %c0_i32_0 = arith.constant 0 : i32
    return %arg0, %c0_i32 : i32, i32
  }
}

</mosaic_0001>

<llo_original>
// kernel: identity_copy.1
$region0: #{identity_copy.1}
  #allocation0 [shape = 'u32[]', space=smem, size = 0x4, offset = 0x4, fixed_abs, tag = 'smem constant byte address 0x4 - core index']
  #allocation1 [shape = 'u32[72,128]{1,0:T(1,128)}', space=vmem, size = 0x9000, scoped, tag = 'internal scratch']
  %s0 = inlined_call_operand.vmem [shape: f32[8,256], index: 0, kind: input, shape index: {}]
  %s1 = inlined_call_operand.vmem [shape: f32[8,256], index: 1, kind: output, shape index: {}]
  %s2 = sld [smem:[#allocation0]]
  $region14: #{identity_copy.1} parent=0
    _
  %s4 = ssub.s32 1, %s2
  %s5 = scalar_select 0, %s4, %s2
  // Predicated region
  $region2: #{identity_copy.1} parent=0 // pred_check
    _
  $region3: #{identity_copy.1} parent=0 // pred_check_branch
    %7 = sbr.rel (0) target = $region5
  $region4: #{identity_copy.1} parent=0 // pred_region
    _
  $region5: #{identity_copy.1} parent=0 // pred_fallthru
    _
  %v8 = vld [vmem:[%s0] sm:$0xff]
  %v9 = vld [vmem:[%s0 + $0x8] sm:$0xff]
  %10 = vst [vmem:[%s1] sm:$0xff] %v8
  %11 = vst [vmem:[%s1 + $0x8] sm:$0xff] %v9
  // Predicated region
  $region6: #{identity_copy.1} parent=0 // pred_check
    _
  $region7: #{identity_copy.1} parent=0 // pred_check_branch
    %13 = sbr.rel (0) target = $region9
  $region8: #{identity_copy.1} parent=0 // pred_region
    _
  $region9: #{identity_copy.1} parent=0 // pred_fallthru
    _
  // Predicated region
  $region10: #{identity_copy.1} parent=0 // pred_check
    _
  $region11: #{identity_copy.1} parent=0 // pred_check_branch
    %15 = sbr.rel (0) target = $region13
  $region12: #{identity_copy.1} parent=0 // pred_region
    _
  $region13: #{identity_copy.1} parent=0 // pred_fallthru
    _

</llo_original>
